<compile_context>
chip_gen: v7x
topology: tpu7x:2x2x1
jax: 0.10.0
libtpu: 0.0.40
codegen_flags: <defaults>
</compile_context>

<pallas_src>
import functools

import jax
import jax.numpy as jnp
import numpy as np
from jax.experimental import pallas as pl
from jax.experimental.pallas import tpu as pltpu


def _round_up(x, m):
    return (x + m - 1) // m * m


# ---------------------------------------------------------------------------
# Pallas kernel: streaming GEMM + bias  (tm, K) @ (K, D) + (1, D) -> (tm, D)
# Weight and bias blocks have constant block indices, so they stay
# VMEM-resident across all grid steps (single-buffered, DMA'd once).
# ---------------------------------------------------------------------------
def _patch_proj_kernel(p_ref, w_ref, b_ref, o_ref):
    o_ref[...] = (
        jnp.dot(p_ref[...], w_ref[...], preferred_element_type=jnp.float32)
        + b_ref[...]
    ).astype(o_ref.dtype)


def _resident_spec(block_shape):
    """BlockSpec for an operand with a constant index_map (weight / bias).

    Single-buffer it when the installed Pallas supports pipeline_mode, halving
    its VMEM footprint; fall back to the default double-buffered spec."""
    try:
        return pl.BlockSpec(block_shape, lambda i: (0, 0),
                            pipeline_mode=pl.Buffered(1))
    except Exception:  # pragma: no cover - older Pallas without pipeline_mode
        return pl.BlockSpec(block_shape, lambda i: (0, 0))


def _patch_proj(patches, w_kd, bias_row, out_dtype, *, tm, vmem_cap):
    M, K = patches.shape
    Kw, D = w_kd.shape
    assert Kw == K

    bytes_in = patches.dtype.itemsize
    bytes_out = jnp.dtype(out_dtype).itemsize
    grid_m = pl.cdiv(M, tm)

    # Advisory cost hint so XLA overlaps the wrapper-side patch gather with us.
    cost = pl.CostEstimate(
        flops=2 * M * K * D,
        transcendentals=0,
        bytes_accessed=M * K * bytes_in + K * D * bytes_in + M * D * bytes_out,
    )

    # VMEM budget: double-buffered patch/output tiles + single-buffered
    # resident weight + bias.  Cap against the physical capacity of this chip.
    vmem_need = (
        2 * tm * K * bytes_in            # streamed patch tiles
        + K * D * bytes_in               # resident weight (single buffered)
        + 2 * tm * D * bytes_out         # output tiles
        + D * 4                          # resident f32 bias
    )
    vmem_limit = int(min(max(2 * vmem_need, 16 * 1024 * 1024),
                         int(0.6 * vmem_cap)))

    return pl.pallas_call(
        _patch_proj_kernel,
        out_shape=jax.ShapeDtypeStruct((M, D), out_dtype),
        grid_spec=pltpu.PrefetchScalarGridSpec(
            num_scalar_prefetch=0,
            grid=(grid_m,),
            in_specs=[
                pl.BlockSpec((tm, K), lambda i: (i, 0)),   # patch tile (streamed)
                _resident_spec((K, D)),                    # weight (resident)
                _resident_spec((1, D)),                    # bias (resident)
            ],
            out_specs=pl.BlockSpec((tm, D), lambda i: (i, 0)),
        ),
        compiler_params=pltpu.CompilerParams(
            dimension_semantics=("parallel",),
            vmem_limit_bytes=vmem_limit,
        ),
        cost_estimate=cost,
    )(patches, w_kd, bias_row)


# ---------------------------------------------------------------------------
# PatchEmbed wrapper (glue reshapes/padding in plain JAX, matmul in Pallas)
# ---------------------------------------------------------------------------
@functools.partial(
    jax.jit, static_argnames=("patch_size", "compute_dtype", "out_dtype"))
def patch_embed(x, weight, bias, *, patch_size, compute_dtype=None,
                out_dtype=None):
    """x: (B, C, H, W) NCHW.  weight: (D, C, pH, pW).  bias: (D,).
    Returns (B, N, D) with N = (H // pH) * (W // pW).

    compute_dtype: operand dtype for the matmul (accumulation is always f32).
      Defaults to bf16 when x is f32 (full-rate MXU on all generations).
      Pass jnp.float32 for the exact path.
    out_dtype: output dtype (defaults to x.dtype); pass jnp.bfloat16 if the
      downstream consumer is bf16 to halve the output writeback."""
    B, C, H, W = x.shape
    pH, pW = patch_size
    D = weight.shape[0]
    assert H % pH == 0 and W % pW == 0
    nH, nW = H // pH, W // pW
    N = nH * nW
    M = B * N
    K = C * pH * pW

    odt = jnp.dtype(out_dtype) if out_dtype is not None else x.dtype
    if compute_dtype is not None:
        cdt = jnp.dtype(compute_dtype)
    elif x.dtype == jnp.float32:
        cdt = jnp.dtype(jnp.bfloat16)      # default fast path, f32 accumulation
    else:
        cdt = jnp.dtype(x.dtype)

    # (B, C, H, W) -> (B, nH, nW, C, pH, pW) -> (M, K); compute-dtype cast
    # fused into this rearrangement so the materialized patch matrix is narrow.
    p = x.reshape(B, C, nH, pH, nW, pW).transpose(0, 2, 4, 1, 3, 5)
    patches = p.reshape(M, K).astype(cdt)
    w_kd = weight.reshape(D, K).T.astype(cdt)                  # (K, D)
    b_row = bias.reshape(1, D).astype(jnp.float32)

    # Lane-dense K/D padding only (zeros keep the GEMM exact).  M is unpadded:
    # the ragged tail grid block is clipped on writeback.
    K_pad = _round_up(K, 128)
    D_pad = _round_up(D, 128)
    if K_pad != K:
        patches = jnp.pad(patches, ((0, 0), (0, K_pad - K)))
        w_kd = jnp.pad(w_kd, ((0, K_pad - K), (0, 0)))
    if D_pad != D:
        w_kd = jnp.pad(w_kd, ((0, 0), (0, D_pad - D)))
        b_row = jnp.pad(b_row, ((0, 0), (0, D_pad - D)))

    # Generation-aware tiling: big tiles on 128-MiB-VMEM parts (v5e/v6e),
    # conservative on v7x (64 MiB).  Always try for >= 2 grid steps so the
    # "parallel" axis can shard across both v7x TensorCores.
    try:
        info = pltpu.get_tpu_info()
        vmem_cap = int(getattr(info, "vmem_capacity_bytes", 64 * 1024 * 1024))
    except Exception:  # pragma: no cover - query unavailable
        vmem_cap = 64 * 1024 * 1024
    tm_cap = 2048 if vmem_cap >= 100 * 1024 * 1024 else 512
    align = 8 * max(1, 4 // jnp.dtype(cdt).itemsize)   # sublane pack (16 bf16)
    tm = max(align, min(tm_cap, _round_up(pl.cdiv(M, 2), align)))

    out = _patch_proj(patches, w_kd, b_row, odt, tm=tm, vmem_cap=vmem_cap)
    if D_pad != D:
        out = out[:, :D]
    # norm = Identity (norm_layer=None); flatten_embedding=True -> (B, N, D)
    return out.reshape(B, N, D)


# ---------------------------------------------------------------------------
if __name__ == "__main__":
    # Small config consistent with the module: img 16x16, patch 8, 4 chans, D=32.
    B, C, H, W = 2, 4, 16, 16
    pH = pW = 8
    D = 32

    key = jax.random.PRNGKey(0)
    kx, kw, kb = jax.random.split(key, 3)
    x = jax.random.normal(kx, (B, C, H, W), dtype=jnp.float32)
    # Deterministic synthetic Conv2d parameters (shapes from nn.Conv2d init).
    weight = jax.random.normal(kw, (D, C, pH, pW), dtype=jnp.float32) * 0.02
    bias = jax.random.normal(kb, (D,), dtype=jnp.float32) * 0.02

    # Host-side float32 reference (independent of TPU matmul precision).
    nH, nW = H // pH, W // pW
    xn, wn, bn = np.asarray(x), np.asarray(weight), np.asarray(bias)
    pn = (xn.reshape(B, C, nH, pH, nW, pW)
            .transpose(0, 2, 4, 1, 3, 5)
            .reshape(B * nH * nW, C * pH * pW))
    ref = (pn @ wn.reshape(D, -1).T + bn).reshape(B, nH * nW, D)

    # Exact f32-operand path (tight tolerance).
    out_f32 = patch_embed(x, weight, bias, patch_size=(pH, pW),
                          compute_dtype=jnp.float32)
    out_f32 = jax.block_until_ready(out_f32)
    assert out_f32.shape == (B, nH * nW, D), out_f32.shape
    assert out_f32.dtype == jnp.float32
    assert bool(jnp.allclose(out_f32, ref, atol=1e-4, rtol=1e-4))

    # Default path: bf16 operands, f32 accumulation, f32 output.
    out_def = patch_embed(x, weight, bias, patch_size=(pH, pW))
    out_def = jax.block_until_ready(out_def)
    assert out_def.shape == (B, nH * nW, D), out_def.shape
    assert out_def.dtype == jnp.float32
    assert bool(jnp.allclose(out_def, ref, atol=5e-2, rtol=5e-2))

    # bf16-output path for bf16 downstream consumers.
    out_bf16 = patch_embed(x, weight, bias, patch_size=(pH, pW),
                           out_dtype=jnp.bfloat16)
    out_bf16 = jax.block_until_ready(out_bf16)
    assert out_bf16.shape == (B, nH * nW, D), out_bf16.shape
    assert out_bf16.dtype == jnp.bfloat16
    assert bool(jnp.allclose(out_bf16.astype(jnp.float32), ref,
                             atol=1e-1, rtol=1e-1))

    print("KERNEL_OK")
</pallas_src>

<mosaic_0001>
module attributes {stable_mosaic.version = 11 : i64} {
  func.func @_patch_proj_kernel(%arg0: i32, %arg1: memref<8x256xf32, #tpu.memory_space<vmem>>, %arg2: memref<256x128xf32, #tpu.memory_space<vmem>>, %arg3: memref<1x128xf32, #tpu.memory_space<vmem>>, %arg4: memref<8x128xf32, #tpu.memory_space<vmem>>) attributes {dimension_semantics = [#tpu.dimension_semantics<parallel>], iteration_bounds = array<i64: 1>, scalar_prefetch = 0 : i64, scratch_operands = 0 : i64, tpu.core_type = #tpu.core_type<tc>, window_params = [{transform_indices = @transform_0, window_bounds = array<i64: 8, 256>}, {pipeline_mode = #tpu.pipeline_mode<synchronous>, transform_indices = @transform_1, window_bounds = array<i64: 256, 128>}, {pipeline_mode = #tpu.pipeline_mode<synchronous>, transform_indices = @transform_2, window_bounds = array<i64: 1, 128>}, {transform_indices = @transform_3, window_bounds = array<i64: 8, 128>}]} {
    %c0 = arith.constant 0 : index
    %c0_0 = arith.constant 0 : index
    %0 = vector.load %arg1[%c0, %c0_0] : memref<8x256xf32, #tpu.memory_space<vmem>>, vector<8x256xf32>
    %c0_1 = arith.constant 0 : index
    %c0_2 = arith.constant 0 : index
    %1 = vector.load %arg2[%c0_1, %c0_2] : memref<256x128xf32, #tpu.memory_space<vmem>>, vector<256x128xf32>
    %cst = arith.constant dense<0.000000e+00> : vector<8x128xf32>
    %2 = tpu.matmul %0, %1, %cst {dimension_numbers = #tpu.dot_dimension_numbers<[1], [0], [0], [1], [0, 0, 1, 1], [], []>} : vector<8x256xf32>, vector<256x128xf32>, vector<8x128xf32> -> vector<8x128xf32>
    %c0_3 = arith.constant 0 : index
    %c0_4 = arith.constant 0 : index
    %3 = vector.load %arg3[%c0_3, %c0_4] : memref<1x128xf32, #tpu.memory_space<vmem>>, vector<1x128xf32>
    %4 = vector.broadcast %3 : vector<1x128xf32> to vector<8x128xf32>
    %5 = arith.addf %2, %4 : vector<8x128xf32>
    %c0_5 = arith.constant 0 : index
    %c0_6 = arith.constant 0 : index
    %6 = vector.load %arg4[%c0_5, %c0_6] : memref<8x128xf32, #tpu.memory_space<vmem>>, vector<8x128xf32>
    tpu.vector_store %arg4[%c0_5, %c0_6], %5 {strides = array<i32>} : memref<8x128xf32, #tpu.memory_space<vmem>>, vector<8x128xf32>,
    return
  }
  func.func @transform_0(%arg0: i32) -> (i32, i32) {
    %c0_i32 = arith.constant 0 : i32
    %c0_i32_0 = arith.constant 0 : i32
    return %arg0, %c0_i32 : i32, i32
  }
  func.func @transform_1(%arg0: i32) -> (i32, i32) {
    %c0_i32 = arith.constant 0 : i32
    %c0_i32_0 = arith.constant 0 : i32
    %c0_i32_1 = arith.constant 0 : i32
    return %c0_i32, %c0_i32_0 : i32, i32
  }
  func.func @transform_2(%arg0: i32) -> (i32, i32) {
    %c0_i32 = arith.constant 0 : i32
    %c0_i32_0 = arith.constant 0 : i32
    %c0_i32_1 = arith.constant 0 : i32
    return %c0_i32, %c0_i32_0 : i32, i32
  }
  func.func @transform_3(%arg0: i32) -> (i32, i32) {
    %c0_i32 = arith.constant 0 : i32
    %c0_i32_0 = arith.constant 0 : i32
    return %arg0, %c0_i32 : i32, i32
  }
}

</mosaic_0001>

<llo_original>
// kernel: patch_embed.1
$region0: #{patch_embed.1}
  #allocation0 [shape = 'u32[]', space=smem, size = 0x4, offset = 0x4, fixed_abs, tag = 'smem constant byte address 0x4 - core index']
  #allocation1 [shape = 'u32[144,128]{1,0:T(1,128)}', space=vmem, size = 0x12000, scoped, tag = 'internal scratch']
  %s0 = inlined_call_operand.vmem [shape: f32[8,256], index: 0, kind: input, shape index: {}]
  %s1 = inlined_call_operand.vmem [shape: f32[256,128], index: 1, kind: input, shape index: {}]
  %s2 = inlined_call_operand.vmem [shape: f32[1,128], index: 2, kind: input, shape index: {}]
  %s3 = inlined_call_operand.hbm [shape: f32[8,128], index: 3, kind: output, shape index: {}]
  %s4 = sld [smem:[#allocation0]]
  $region22: #{patch_embed.1} parent=0
    _
  %s6 = ssub.s32 1, %s4
  %s7 = scalar_select 0, %s6, %s4
  $region1: #{patch_embed.1} parent=0
    #allocation2 [shape = 'u8[4096]{0}', space=vmem, size = 0x1000, scoped, tag = 'output window, operand 0, single buffered']
    #allocation3 [shape = 's32[1]{0}', space=sflag, size = 0x4, scoped, tag = 'scoped memory for patch_embed.1']
    %8 = vsyncpa [#allocation3], 0
    // Predicated region
    $region2: #{patch_embed.1} parent=1 // pred_check
      _
    $region3: #{patch_embed.1} parent=1 // pred_check_branch
      %10 = sbr.rel (0) target = $region5
    $region4: #{patch_embed.1} parent=1 // pred_region
      _
    $region5: #{patch_embed.1} parent=1 // pred_fallthru
      _
    // Predicated region
    $region6: #{patch_embed.1} parent=1 // pred_check
      _
    $region7: #{patch_embed.1} parent=1 // pred_check_branch
      %12 = sbr.rel (0) target = $region9
    $region8: #{patch_embed.1} parent=1 // pred_region
      _
    $region9: #{patch_embed.1} parent=1 // pred_fallthru
      _
    // Predicated region
    $region10: #{patch_embed.1} parent=1 // pred_check
      _
    $region11: #{patch_embed.1} parent=1 // pred_check_branch
      %14 = sbr.rel (0) target = $region13
    $region12: #{patch_embed.1} parent=1 // pred_region
      _
    $region13: #{patch_embed.1} parent=1 // pred_fallthru
      _
    %v15 = vld [vmem:[%s0] sm:$0xff]
    %v16 = vld [vmem:[%s0 + $0x8] sm:$0xff]
    %v17 = vld [vmem:[%s1] sm:$0xff]
    %v18 = vld [vmem:[%s1 + $0x8] sm:$0xff]
    %v19 = vld [vmem:[%s1 + $0x10] sm:$0xff]
    %v20 = vld [vmem:[%s1 + $0x18] sm:$0xff]
    %v21 = vld [vmem:[%s1 + $0x20] sm:$0xff]
    %v22 = vld [vmem:[%s1 + $0x28] sm:$0xff]
    %v23 = vld [vmem:[%s1 + $0x30] sm:$0xff]
    %v24 = vld [vmem:[%s1 + $0x38] sm:$0xff]
    %v25 = vld [vmem:[%s1 + $0x40] sm:$0xff]
    %v26 = vld [vmem:[%s1 + $0x48] sm:$0xff]
    %v27 = vld [vmem:[%s1 + $0x50] sm:$0xff]
    %v28 = vld [vmem:[%s1 + $0x58] sm:$0xff]
    %v29 = vld [vmem:[%s1 + $0x60] sm:$0xff]
    %v30 = vld [vmem:[%s1 + $0x68] sm:$0xff]
    %v31 = vld [vmem:[%s1 + $0x70] sm:$0xff]
    %v32 = vld [vmem:[%s1 + $0x78] sm:$0xff]
    %v33 = vld [vmem:[%s1 + $0x80] sm:$0xff]
    %v34 = vld [vmem:[%s1 + $0x88] sm:$0xff]
    %v35 = vld [vmem:[%s1 + $0x90] sm:$0xff]
    %v36 = vld [vmem:[%s1 + $0x98] sm:$0xff]
    %v37 = vld [vmem:[%s1 + $0xa0] sm:$0xff]
    %v38 = vld [vmem:[%s1 + $0xa8] sm:$0xff]
    %v39 = vld [vmem:[%s1 + $0xb0] sm:$0xff]
    %v40 = vld [vmem:[%s1 + $0xb8] sm:$0xff]
    %v41 = vld [vmem:[%s1 + $0xc0] sm:$0xff]
    %v42 = vld [vmem:[%s1 + $0xc8] sm:$0xff]
    %v43 = vld [vmem:[%s1 + $0xd0] sm:$0xff]
    %v44 = vld [vmem:[%s1 + $0xd8] sm:$0xff]
    %v45 = vld [vmem:[%s1 + $0xe0] sm:$0xff]
    %v46 = vld [vmem:[%s1 + $0xe8] sm:$0xff]
    %v47 = vld [vmem:[%s1 + $0xf0] sm:$0xff]
    %v48 = vld [vmem:[%s1 + $0xf8] sm:$0xff]
    %v49 = vld [vmem:[%s2] sm:$0x1]
    %v51 = vlaneseq
    %v52 = vshrl.u32 %v51, 7
    %v53 = vsub.s32 0, %v52
    %v54 = vrot.slane %v49, %v53
    %56 = vmatprep.subr.mxu0 0.0
    %57 = vmatpush1.msra.mxu0 %v17
    %58 = vmatprep.subr.mxu0 0.0
    %59 = vmatpush1.msra.mxu0 %v18
    %60 = vmatprep.subr.mxu0 0.0
    %61 = vmatpush1.msra.mxu0 %v19
    %62 = vmatprep.subr.mxu0 0.0
    %63 = vmatpush1.msra.mxu0 %v20
    %64 = vmatprep.subr.mxu0 0.0
    %65 = vmatpush1.msra.mxu0 %v21
    %66 = vmatprep.subr.mxu0 0.0
    %67 = vmatpush1.msra.mxu0 %v22
    %68 = vmatprep.subr.mxu0 0.0
    %69 = vmatpush1.msra.mxu0 %v23
    %70 = vmatprep.subr.mxu0 0.0
    %71 = vmatpush1.msra.mxu0 %v24
    %72 = vmatprep.subr.mxu0 0.0
    %73 = vmatpush1.msra.mxu0 %v25
    %74 = vmatprep.subr.mxu0 0.0
    %75 = vmatpush1.msra.mxu0 %v26
    %76 = vmatprep.subr.mxu0 0.0
    %77 = vmatpush1.msra.mxu0 %v27
    %78 = vmatprep.subr.mxu0 0.0
    %79 = vmatpush1.msra.mxu0 %v28
    %80 = vmatprep.subr.mxu0 0.0
    %81 = vmatpush1.msra.mxu0 %v29
    %82 = vmatprep.subr.mxu0 0.0
    %83 = vmatpush1.msra.mxu0 %v30
    %84 = vmatprep.subr.mxu0 0.0
    %85 = vmatpush1.msra.mxu0 %v31
    %86 = vmatprep.subr.mxu0 0.0
    %87 = vmatpush1.msra.mxu0 %v32
    %88 = vmatprep.subr.mxu0 0.0
    %89 = vmatpush1.msra.mxu0 %v33
    %90 = vmatprep.subr.mxu0 0.0
    %91 = vmatpush1.msra.mxu0 %v34
    %92 = vmatprep.subr.mxu0 0.0
    %93 = vmatpush1.msra.mxu0 %v35
    %94 = vmatprep.subr.mxu0 0.0
    %95 = vmatpush1.msra.mxu0 %v36
    %96 = vmatprep.subr.mxu0 0.0
    %97 = vmatpush1.msra.mxu0 %v37
    %98 = vmatprep.subr.mxu0 0.0
    %99 = vmatpush1.msra.mxu0 %v38
    %100 = vmatprep.subr.mxu0 0.0
    %101 = vmatpush1.msra.mxu0 %v39
    %102 = vmatprep.subr.mxu0 0.0
    %103 = vmatpush1.msra.mxu0 %v40
    %104 = vmatprep.subr.mxu0 0.0
    %105 = vmatpush1.msra.mxu0 %v41
    %106 = vmatprep.subr.mxu0 0.0
    %107 = vmatpush1.msra.mxu0 %v42
    %108 = vmatprep.subr.mxu0 0.0
    %109 = vmatpush1.msra.mxu0 %v43
    %110 = vmatprep.subr.mxu0 0.0
    %111 = vmatpush1.msra.mxu0 %v44
    %112 = vmatprep.subr.mxu0 0.0
    %113 = vmatpush1.msra.mxu0 %v45
    %114 = vmatprep.subr.mxu0 0.0
    %115 = vmatpush1.msra.mxu0 %v46
    %116 = vmatprep.subr.mxu0 0.0
    %117 = vmatpush1.msra.mxu0 %v47
    %118 = vmatprep.subr.mxu0 0.0
    %119 = vmatpush1.msra.mxu0 %v48
    %120 = vmatprep.mubr.f32.mxu0 %v16
    %121 = vmatmul.mubr.f32.gmra.mrb[0].mxu0 %v15
    %v122 = vpop.f32.mrb[0].mxu0
    %v123 = vadd.f32 %v54, %v122
    %v124 = vpop.f32.mrb[0].mxu0
    %125 = vdwg.mxu0
    %126 = vst [vmem:[#allocation2] sm:$0xff] %v123
    // Predicated region
    $region14: #{patch_embed.1} parent=1 // pred_check
      _
    $region15: #{patch_embed.1} parent=1 // pred_check_branch
      %128 = sbr.rel (0) target = $region17
    $region16: #{patch_embed.1} parent=1 // pred_region
      %s130 = ssub.s32 128, 128
      %131 = vsyncadd [#allocation3], %s130
      %s133 = sshll.u32 [#allocation2], 4
      %s134 = int_to_ptr.vmem [resolvable:$true] %s133
      %136 = dma.vmem_to_hbm [thread:$0]  %s134, 128, %s3, [#allocation3]
    $region17: #{patch_embed.1} parent=1 // pred_fallthru
      _
    // Predicated region
    $region18: #{patch_embed.1} parent=1 // pred_check
      _
    $region19: #{patch_embed.1} parent=1 // pred_check_branch
      %138 = sbr.rel (0) target = $region21
    $region20: #{patch_embed.1} parent=1 // pred_region
      %139 = dma.done [#allocation3], 128
    $region21: #{patch_embed.1} parent=1 // pred_fallthru
      _
    %140 = vsyncpa [#allocation3], 1

</llo_original>
